<compile_context>
chip_gen: v7x
topology: tpu7x:2x2x1
jax: 0.10.0
libtpu: 0.0.40
codegen_flags: <defaults>
</compile_context>

<pallas_src>
import functools

import jax
import jax.numpy as jnp
from jax.experimental import pallas as pl
from jax.experimental.pallas import tpu as pltpu

_LN_EPS = 1e-5


def _patch_merge_kernel(x_ref, w_ref, gb_ref, o_ref, *, c_valid, eps):
    # x_ref : (tile_h, 2, wh_pad, 2C)   native dtype, one contiguous HBM slab per row-group
    # w_ref : (2, 2C, 2Cp)              matmul dtype, resident (constant index map)
    # gb_ref: (2, 2Cp)                  f32: row 0 = gamma, row 1 = beta (zero in pad lanes)
    # o_ref : (tile_h, wh_pad, 2Cp)
    th, _, whp, c2 = x_ref.shape
    c_pad = o_ref.shape[-1]
    n = th * whp

    # Row-parity slabs -> dense (rows, 2C).  wh_pad is a sublane-pack multiple by
    # construction, so both reshapes here (and the final split below) are layout-free.
    xa = x_ref[:, 0, :, :].reshape(n, c2)      # even image rows: [x0 | x2] channels
    xb = x_ref[:, 1, :, :].reshape(n, c2)      # odd  image rows: [x1 | x3] channels
    wa = w_ref[0]
    wb = w_ref[1]
    if xa.dtype != wa.dtype:                   # optional bf16 MXU path (v5e f32 inputs)
        xa = xa.astype(wa.dtype)
        xb = xb.astype(wa.dtype)
    y = jnp.dot(xa, wa, preferred_element_type=jnp.float32)
    y = y + jnp.dot(xb, wb, preferred_element_type=jnp.float32)

    # LayerNorm over the true c_valid features.  Padded lanes of y are exact zeros
    # (zero weight columns) so the mean is unaffected; they are masked out of the
    # two-pass variance.  rsqrt goes to the EUP (free slot for this DMA-bound op).
    inv_n = jnp.float32(1.0 / c_valid)
    mean = jnp.sum(y, axis=-1, keepdims=True) * inv_n
    cen = y - mean
    if c_valid != c_pad:
        lane = jax.lax.broadcasted_iota(jnp.int32, (1, c_pad), 1)
        cen_v = jnp.where(lane < c_valid, cen, 0.0)
    else:
        cen_v = cen
    var = jnp.sum(cen_v * cen_v, axis=-1, keepdims=True) * inv_n
    scale = jax.lax.rsqrt(var + jnp.float32(eps))

    gamma = gb_ref[0:1, :]                     # (1, 2Cp), zero in pad lanes
    beta = gb_ref[1:2, :]
    out = cen * scale * gamma + beta           # pad lanes come out exactly 0
    o_ref[...] = out.reshape(th, whp, c_pad).astype(o_ref.dtype)


def _round_up(x, m):
    return ((x + m - 1) // m) * m


def _sublane_pack(dtype):
    # Sublane packing: 8 rows for 4-byte, 16 for 2-byte, 32 for 1-byte dtypes.
    return max(8, 32 // jnp.dtype(dtype).itemsize)


def _vmem_limit_bytes():
    """Generation-aware scoped-VMEM limit (v5e/v6e: 128 MiB phys, v7x: 64 MiB)."""
    try:
        cap = int(pltpu.get_tpu_info().vmem_capacity_bytes)
    except Exception:
        cap = 64 * 1024 * 1024                 # conservative fallback (v7x per-core)
    return int(min(max(cap * 3 // 4, 32 * 1024 * 1024), 100 * 1024 * 1024))


def _choose_tile_h(bh, wh_pad, c2, c_pad, x_item, w_item, max_rows, vmem_limit):
    """Largest row-group tile that fits the VMEM budget (cdiv grid, ragged last tile)."""
    # Resident operands (constant index maps); conservatively counted double-buffered.
    fixed = 2 * (2 * c2 * c_pad * w_item) + 2 * (2 * c_pad * 4)
    unit = (2 * (2 * wh_pad * c2 * x_item)     # double-buffered input slab / row-group
            + 2 * (wh_pad * c_pad * x_item)    # double-buffered output tile / row-group
            + wh_pad * (2 * c2 * 4 + 6 * c_pad * 4))   # rough f32 temporaries
    headroom = 8 * 1024 * 1024                 # compiler internal scratch, semaphores
    budget = max(vmem_limit - fixed - headroom, unit)
    tile_h = max(1, min(bh, budget // unit))
    if max_rows is not None:
        tile_h = max(1, min(tile_h, max(1, max_rows // wh_pad)))
    # Balance the cdiv grid and keep the step count even (>1) so a megacore
    # "parallel" split over the single grid axis is not lopsided.
    g = pl.cdiv(bh, tile_h)
    if g > 1 and g % 2 == 1:
        g = min(g + 1, bh)
    tile_h = pl.cdiv(bh, g)
    return int(tile_h)


@functools.partial(
    jax.jit, static_argnames=("img_h", "img_w", "max_tile_rows", "mxu_bf16"))
def patch_merge(x, weight, gamma, beta, *, img_h, img_w,
                max_tile_rows=None, mxu_bf16=False):
    """
    x:      [B, H*W, C]   (channels-last, matching the PyTorch 'b (h w) c')
    weight: [2C, 4C]      nn.Linear(4C, 2C, bias=False) weight ([out, in])
    gamma:  [2C]          nn.LayerNorm weight
    beta:   [2C]          nn.LayerNorm bias
    returns [B, (H/2)*(W/2), 2C]
    """
    B, L, C = x.shape
    assert L == img_h * img_w, f"x shape {x.shape} does not match img size"
    assert img_h % 2 == 0 and img_w % 2 == 0, "img size should be even"
    assert weight.shape == (2 * C, 4 * C), weight.shape

    hh, wh = img_h // 2, img_w // 2
    c2 = 2 * C                      # per-row-parity input features (even-col C | odd-col C)
    c_out = 2 * C                   # true output features
    c_pad = _round_up(c_out, 128)   # lane-dense output features
    bh = B * hh

    pack = _sublane_pack(x.dtype)
    wh_pad = _round_up(wh, pack)    # sublane-dense row-group height (block overhang only)

    # Free reshape: [B, H, W, C] -> [B*H/2, 2, W/2, 2C].  Row j of the trailing
    # [W/2, 2C] slab is [x(2i+s, 2j, :), x(2i+s, 2j+1, :)].
    x_view = x.reshape(bh, 2, wh, c2)

    use_bf16 = bool(mxu_bf16) and jnp.dtype(x.dtype) == jnp.dtype(jnp.float32)
    w_dtype = jnp.bfloat16 if use_bf16 else x.dtype

    # Pre-permute/split the reduction weight so the two accumulated row-parity matmuls
    # reproduce concat([x0,x1,x2,x3]) @ W.T; zero-pad output columns to c_pad lanes.
    w0, w1, w2, w3 = jnp.split(weight, 4, axis=1)               # each [2C, C]
    w_even = jnp.concatenate([w0, w2], axis=1).T                # [2C, 2C]
    w_odd = jnp.concatenate([w1, w3], axis=1).T                 # [2C, 2C]
    w_hw = jnp.stack([w_even, w_odd], axis=0)                   # [2, 2C, 2C]
    if c_pad != c_out:
        w_hw = jnp.pad(w_hw, ((0, 0), (0, 0), (0, c_pad - c_out)))
    w_hw = w_hw.astype(w_dtype)

    gb = jnp.stack([gamma, beta], axis=0).astype(jnp.float32)   # [2, 2C]
    if c_pad != c_out:
        gb = jnp.pad(gb, ((0, 0), (0, c_pad - c_out)))

    x_item = jnp.dtype(x.dtype).itemsize
    w_item = jnp.dtype(w_dtype).itemsize
    vmem_limit = _vmem_limit_bytes()
    tile_h = _choose_tile_h(bh, wh_pad, c2, c_pad, x_item, w_item,
                            max_tile_rows, vmem_limit)
    grid = (pl.cdiv(bh, tile_h),)

    flops = 4 * bh * wh_pad * c2 * c_pad + 8 * bh * wh_pad * c_pad
    bytes_accessed = (x.size * x_item + 2 * c2 * c_pad * w_item
                      + bh * wh * c_pad * x_item + 2 * c_pad * 4)
    cost = pl.CostEstimate(flops=flops, transcendentals=bh * wh_pad,
                           bytes_accessed=bytes_accessed)

    kernel = functools.partial(_patch_merge_kernel, c_valid=c_out, eps=_LN_EPS)

    out = pl.pallas_call(
        kernel,
        out_shape=jax.ShapeDtypeStruct((bh, wh, c_pad), x.dtype),
        grid_spec=pltpu.PrefetchScalarGridSpec(
            num_scalar_prefetch=0,
            grid=grid,
            in_specs=[
                pl.BlockSpec((tile_h, 2, wh_pad, c2), lambda i: (i, 0, 0, 0)),
                pl.BlockSpec((2, c2, c_pad), lambda i: (0, 0, 0)),
                pl.BlockSpec((2, c_pad), lambda i: (0, 0)),
            ],
            out_specs=pl.BlockSpec((tile_h, wh_pad, c_pad), lambda i: (i, 0, 0)),
        ),
        compiler_params=pltpu.CompilerParams(
            dimension_semantics=("parallel",),
            vmem_limit_bytes=vmem_limit,
        ),
        cost_estimate=cost,
    )(x_view, w_hw, gb)

    if c_pad != c_out:
        out = out[:, :, :c_out]     # callers wanting max perf can consume the padded slab
    return out.reshape(B, hh * wh, c_out)


def _reference(x, weight, gamma, beta, img_h, img_w):
    """Pure-JAX reference mirroring the PyTorch forward."""
    B, L, C = x.shape
    xg = x.reshape(B, img_h, img_w, C)
    x0 = xg[:, 0::2, 0::2, :]
    x1 = xg[:, 1::2, 0::2, :]
    x2 = xg[:, 0::2, 1::2, :]
    x3 = xg[:, 1::2, 1::2, :]
    xc = jnp.concatenate([x0, x1, x2, x3], axis=-1).reshape(B, -1, 4 * C)
    y = jnp.einsum("blk,ok->blo", xc, weight)
    mean = jnp.mean(y, axis=-1, keepdims=True)
    var = jnp.mean((y - mean) ** 2, axis=-1, keepdims=True)
    return (y - mean) / jnp.sqrt(var + _LN_EPS) * gamma + beta


if __name__ == "__main__":
    key = jax.random.PRNGKey(0)
    k1, k2, k3, k4, k5 = jax.random.split(key, 5)

    # Case 1: tiny shapes, lane-padded output (2C=8 -> 128), W/2 already sublane-aligned.
    B, C, H, W = 2, 4, 16, 16
    x = jax.random.normal(k1, (B, H * W, C), dtype=jnp.float32)
    weight = 0.1 * jax.random.normal(k2, (2 * C, 4 * C), dtype=jnp.float32)
    gamma = jnp.ones((2 * C,), dtype=jnp.float32)
    beta = jnp.zeros((2 * C,), dtype=jnp.float32)
    out = jax.block_until_ready(patch_merge(x, weight, gamma, beta, img_h=H, img_w=W))
    ref = _reference(x, weight, gamma, beta, H, W)
    assert out.shape == (B, (H // 2) * (W // 2), 2 * C), out.shape
    err1 = float(jnp.max(jnp.abs(out - ref)))
    assert err1 < 1e-4, err1

    # Case 2: W/2 not a sublane multiple (wh=6 -> wh_pad=8 block overhang), masked LN
    # stats (2C=48 -> 128 lanes), multi-step even grid with a ragged last row tile.
    B, C, H, W = 3, 24, 12, 12
    x = jax.random.normal(k3, (B, H * W, C), dtype=jnp.float32)
    weight = 0.1 * jax.random.normal(k4, (2 * C, 4 * C), dtype=jnp.float32)
    gamma = 1.0 + 0.1 * jax.random.normal(k5, (2 * C,), dtype=jnp.float32)
    beta = 0.05 * jnp.arange(2 * C, dtype=jnp.float32)
    out = jax.block_until_ready(
        patch_merge(x, weight, gamma, beta, img_h=H, img_w=W, max_tile_rows=40))
    ref = _reference(x, weight, gamma, beta, H, W)
    assert out.shape == ref.shape, (out.shape, ref.shape)
    err2 = float(jnp.max(jnp.abs(out - ref)))
    assert err2 < 2e-2, err2          # loose: tolerates MXU default-precision differences

    print("KERNEL_OK")
</pallas_src>

<mosaic_0001>
module attributes {stable_mosaic.version = 11 : i64} {
  func.func @_patch_merge_kernel(%arg0: i32, %arg1: memref<16x2x8x8xf32, #tpu.memory_space<vmem>>, %arg2: memref<2x8x128xf32, #tpu.memory_space<vmem>>, %arg3: memref<2x128xf32, #tpu.memory_space<vmem>>, %arg4: memref<16x8x128xf32, #tpu.memory_space<vmem>>) attributes {dimension_semantics = [#tpu.dimension_semantics<parallel>], iteration_bounds = array<i64: 1>, scalar_prefetch = 0 : i64, scratch_operands = 0 : i64, tpu.core_type = #tpu.core_type<tc>, window_params = [{transform_indices = @transform_0, window_bounds = array<i64: 16, 2, 8, 8>}, {pipeline_mode = #tpu.pipeline_mode<synchronous>, transform_indices = @transform_1, window_bounds = array<i64: 2, 8, 128>}, {pipeline_mode = #tpu.pipeline_mode<synchronous>, transform_indices = @transform_2, window_bounds = array<i64: 2, 128>}, {transform_indices = @transform_3, window_bounds = array<i64: 16, 8, 128>}]} {
    %c0 = arith.constant 0 : index
    %c0_0 = arith.constant 0 : index
    %c0_1 = arith.constant 0 : index
    %c0_2 = arith.constant 0 : index
    %0 = vector.load %arg1[%c0, %c0_0, %c0_1, %c0_2] : memref<16x2x8x8xf32, #tpu.memory_space<vmem>>, vector<16x1x8x8xf32>
    %1 = vector.shape_cast %0 : vector<16x1x8x8xf32> to vector<16x8x8xf32>
    %2 = vector.shape_cast %1 : vector<16x8x8xf32> to vector<128x8xf32>
    %c0_3 = arith.constant 0 : index
    %c1 = arith.constant 1 : index
    %c0_4 = arith.constant 0 : index
    %c0_5 = arith.constant 0 : index
    %3 = vector.load %arg1[%c0_3, %c1, %c0_4, %c0_5] : memref<16x2x8x8xf32, #tpu.memory_space<vmem>>, vector<16x1x8x8xf32>
    %4 = vector.shape_cast %3 : vector<16x1x8x8xf32> to vector<16x8x8xf32>
    %5 = vector.shape_cast %4 : vector<16x8x8xf32> to vector<128x8xf32>
    %c0_6 = arith.constant 0 : index
    %c0_7 = arith.constant 0 : index
    %c0_8 = arith.constant 0 : index
    %6 = vector.load %arg2[%c0_6, %c0_7, %c0_8] : memref<2x8x128xf32, #tpu.memory_space<vmem>>, vector<1x8x128xf32>
    %7 = vector.shape_cast %6 : vector<1x8x128xf32> to vector<8x128xf32>
    %c1_9 = arith.constant 1 : index
    %c0_10 = arith.constant 0 : index
    %c0_11 = arith.constant 0 : index
    %8 = vector.load %arg2[%c1_9, %c0_10, %c0_11] : memref<2x8x128xf32, #tpu.memory_space<vmem>>, vector<1x8x128xf32>
    %9 = vector.shape_cast %8 : vector<1x8x128xf32> to vector<8x128xf32>
    %cst = arith.constant dense<0.000000e+00> : vector<128x128xf32>
    %10 = tpu.matmul %2, %7, %cst {dimension_numbers = #tpu.dot_dimension_numbers<[1], [0], [0], [1], [0, 0, 1, 1], [], []>} : vector<128x8xf32>, vector<8x128xf32>, vector<128x128xf32> -> vector<128x128xf32>
    %cst_12 = arith.constant dense<0.000000e+00> : vector<128x128xf32>
    %11 = tpu.matmul %5, %9, %cst_12 {dimension_numbers = #tpu.dot_dimension_numbers<[1], [0], [0], [1], [0, 0, 1, 1], [], []>} : vector<128x8xf32>, vector<8x128xf32>, vector<128x128xf32> -> vector<128x128xf32>
    %12 = arith.addf %10, %11 : vector<128x128xf32>
    %cst_13 = arith.constant dense<0.000000e+00> : vector<128xf32>
    %13 = vector.multi_reduction <add>, %12, %cst_13 [1] : vector<128x128xf32> to vector<128xf32>
    %14 = vector.shape_cast %13 : vector<128xf32> to vector<128x1xf32>
    %cst_14 = arith.constant 1.250000e-01 : f32
    %15 = vector.broadcast %cst_14 : f32 to vector<128x1xf32>
    %16 = arith.mulf %14, %15 : vector<128x1xf32>
    %17 = vector.broadcast %16 : vector<128x1xf32> to vector<128x128xf32>
    %18 = arith.subf %12, %17 : vector<128x128xf32>
    %19 = tpu.iota {dimensions = array<i32: 1>} : vector<1x128xi32>
    %c8_i32 = arith.constant 8 : i32
    %20 = vector.broadcast %c8_i32 : i32 to vector<1x128xi32>
    %21 = arith.cmpi slt, %19, %20 : vector<1x128xi32>
    %cst_15 = arith.constant 0.000000e+00 : f32
    %22 = vector.shape_cast %21 : vector<1x128xi1> to vector<1x128xi1>
    %23 = vector.broadcast %22 : vector<1x128xi1> to vector<128x128xi1>
    %24 = vector.broadcast %cst_15 : f32 to vector<128x128xf32>
    %25 = arith.select %23, %18, %24 : vector<128x128xi1>, vector<128x128xf32>
    %26 = arith.mulf %25, %25 : vector<128x128xf32>
    %cst_16 = arith.constant dense<0.000000e+00> : vector<128xf32>
    %27 = vector.multi_reduction <add>, %26, %cst_16 [1] : vector<128x128xf32> to vector<128xf32>
    %28 = vector.shape_cast %27 : vector<128xf32> to vector<128x1xf32>
    %cst_17 = arith.constant 1.250000e-01 : f32
    %29 = vector.broadcast %cst_17 : f32 to vector<128x1xf32>
    %30 = arith.mulf %28, %29 : vector<128x1xf32>
    %cst_18 = arith.constant 9.99999974E-6 : f32
    %31 = vector.broadcast %cst_18 : f32 to vector<128x1xf32>
    %32 = arith.addf %30, %31 : vector<128x1xf32>
    %33 = math.rsqrt %32 : vector<128x1xf32>
    %c0_19 = arith.constant 0 : index
    %c0_20 = arith.constant 0 : index
    %34 = vector.load %arg3[%c0_19, %c0_20] : memref<2x128xf32, #tpu.memory_space<vmem>>, vector<1x128xf32>
    %c1_21 = arith.constant 1 : index
    %c0_22 = arith.constant 0 : index
    %35 = vector.load %arg3[%c1_21, %c0_22] : memref<2x128xf32, #tpu.memory_space<vmem>>, vector<1x128xf32>
    %36 = vector.broadcast %33 : vector<128x1xf32> to vector<128x128xf32>
    %37 = arith.mulf %18, %36 : vector<128x128xf32>
    %38 = vector.broadcast %34 : vector<1x128xf32> to vector<128x128xf32>
    %39 = arith.mulf %37, %38 : vector<128x128xf32>
    %40 = vector.broadcast %35 : vector<1x128xf32> to vector<128x128xf32>
    %41 = arith.addf %39, %40 : vector<128x128xf32>
    %42 = vector.shape_cast %41 : vector<128x128xf32> to vector<16x8x128xf32>
    %c0_23 = arith.constant 0 : index
    %c0_24 = arith.constant 0 : index
    %c0_25 = arith.constant 0 : index
    %43 = vector.load %arg4[%c0_23, %c0_24, %c0_25] : memref<16x8x128xf32, #tpu.memory_space<vmem>>, vector<16x8x128xf32>
    tpu.vector_store %arg4[%c0_23, %c0_24, %c0_25], %42 {strides = array<i32>} : memref<16x8x128xf32, #tpu.memory_space<vmem>>, vector<16x8x128xf32>,
    return
  }
  func.func @transform_0(%arg0: i32) -> (i32, i32, i32, i32) {
    %c0_i32 = arith.constant 0 : i32
    %c0_i32_0 = arith.constant 0 : i32
    %c0_i32_1 = arith.constant 0 : i32
    %c0_i32_2 = arith.constant 0 : i32
    return %arg0, %c0_i32, %c0_i32_0, %c0_i32_1 : i32, i32, i32, i32
  }
  func.func @transform_1(%arg0: i32) -> (i32, i32, i32) {
    %c0_i32 = arith.constant 0 : i32
    %c0_i32_0 = arith.constant 0 : i32
    %c0_i32_1 = arith.constant 0 : i32
    %c0_i32_2 = arith.constant 0 : i32
    return %c0_i32, %c0_i32_0, %c0_i32_1 : i32, i32, i32
  }
  func.func @transform_2(%arg0: i32) -> (i32, i32) {
    %c0_i32 = arith.constant 0 : i32
    %c0_i32_0 = arith.constant 0 : i32
    %c0_i32_1 = arith.constant 0 : i32
    return %c0_i32, %c0_i32_0 : i32, i32
  }
  func.func @transform_3(%arg0: i32) -> (i32, i32, i32) {
    %c0_i32 = arith.constant 0 : i32
    %c0_i32_0 = arith.constant 0 : i32
    %c0_i32_1 = arith.constant 0 : i32
    return %arg0, %c0_i32, %c0_i32_0 : i32, i32, i32
  }
}

</mosaic_0001>

<llo_original>
// kernel: patch_merge.1
$region0: #{patch_merge.1}
  #allocation0 [shape = 'u32[]', space=smem, size = 0x4, offset = 0x4, fixed_abs, tag = 'smem constant byte address 0x4 - core index']
  #allocation1 [shape = 'u32[144,128]{1,0:T(1,128)}', space=vmem, size = 0x12000, scoped, tag = 'internal scratch']
  %s0 = inlined_call_operand.vmem [shape: f32[16,2,8,8], index: 0, kind: input, shape index: {}]
  %s1 = inlined_call_operand.vmem [shape: f32[2,8,128], index: 1, kind: input, shape index: {}]
  %s2 = inlined_call_operand.vmem [shape: f32[2,128], index: 2, kind: input, shape index: {}]
  %s3 = inlined_call_operand.vmem [shape: f32[16,8,128], index: 3, kind: output, shape index: {}]
  %s4 = sld [smem:[#allocation0]]
  $region22: #{patch_merge.1} parent=0
    _
  %s6 = ssub.s32 1, %s4
  %s7 = scalar_select 0, %s6, %s4
  // Predicated region
  $region2: #{patch_merge.1} parent=0 // pred_check
    _
  $region3: #{patch_merge.1} parent=0 // pred_check_branch
    %9 = sbr.rel (0) target = $region5
  $region4: #{patch_merge.1} parent=0 // pred_region
    _
  $region5: #{patch_merge.1} parent=0 // pred_fallthru
    _
  // Predicated region
  $region6: #{patch_merge.1} parent=0 // pred_check
    _
  $region7: #{patch_merge.1} parent=0 // pred_check_branch
    %11 = sbr.rel (0) target = $region9
  $region8: #{patch_merge.1} parent=0 // pred_region
    _
  $region9: #{patch_merge.1} parent=0 // pred_fallthru
    _
  // Predicated region
  $region10: #{patch_merge.1} parent=0 // pred_check
    _
  $region11: #{patch_merge.1} parent=0 // pred_check_branch
    %13 = sbr.rel (0) target = $region13
  $region12: #{patch_merge.1} parent=0 // pred_region
    _
  $region13: #{patch_merge.1} parent=0 // pred_fallthru
    _
  %v14 = vld [vmem:[%s0] sm:$0xff]
  %v15 = vld [vmem:[%s0 + $0x10] sm:$0xff]
  %v16 = vld [vmem:[%s0 + $0x20] sm:$0xff]
  %v17 = vld [vmem:[%s0 + $0x30] sm:$0xff]
  %v18 = vld [vmem:[%s0 + $0x40] sm:$0xff]
  %v19 = vld [vmem:[%s0 + $0x50] sm:$0xff]
  %v20 = vld [vmem:[%s0 + $0x60] sm:$0xff]
  %v21 = vld [vmem:[%s0 + $0x70] sm:$0xff]
  %v22 = vld [vmem:[%s0 + $0x80] sm:$0xff]
  %v23 = vld [vmem:[%s0 + $0x90] sm:$0xff]
  %v24 = vld [vmem:[%s0 + $0xa0] sm:$0xff]
  %v25 = vld [vmem:[%s0 + $0xb0] sm:$0xff]
  %v26 = vld [vmem:[%s0 + $0xc0] sm:$0xff]
  %v27 = vld [vmem:[%s0 + $0xd0] sm:$0xff]
  %v28 = vld [vmem:[%s0 + $0xe0] sm:$0xff]
  %v29 = vld [vmem:[%s0 + $0xf0] sm:$0xff]
  %s30 = scalar_lea.vmem %s0, 8
  %v31 = vld [vmem:[%s30] sm:$0xff]
  %v32 = vld [vmem:[%s30 + $0x10] sm:$0xff]
  %v33 = vld [vmem:[%s30 + $0x20] sm:$0xff]
  %v34 = vld [vmem:[%s30 + $0x30] sm:$0xff]
  %v35 = vld [vmem:[%s30 + $0x40] sm:$0xff]
  %v36 = vld [vmem:[%s30 + $0x50] sm:$0xff]
  %v37 = vld [vmem:[%s30 + $0x60] sm:$0xff]
  %v38 = vld [vmem:[%s30 + $0x70] sm:$0xff]
  %v39 = vld [vmem:[%s30 + $0x80] sm:$0xff]
  %v40 = vld [vmem:[%s30 + $0x90] sm:$0xff]
  %v41 = vld [vmem:[%s30 + $0xa0] sm:$0xff]
  %v42 = vld [vmem:[%s30 + $0xb0] sm:$0xff]
  %v43 = vld [vmem:[%s30 + $0xc0] sm:$0xff]
  %v44 = vld [vmem:[%s30 + $0xd0] sm:$0xff]
  %v45 = vld [vmem:[%s30 + $0xe0] sm:$0xff]
  %v46 = vld [vmem:[%s30 + $0xf0] sm:$0xff]
  %v47 = vld [vmem:[%s1] sm:$0xff]
  %s48 = scalar_lea.vmem %s1, 8
  %v49 = vld [vmem:[%s48] sm:$0xff]
  %vm50 = vcmask 64512
  %v52 = vsel %vm50, %v31, 0
  %v55 = vsel %vm50, %v32, 0
  %v58 = vsel %vm50, %v33, 0
  %v61 = vsel %vm50, %v34, 0
  %v64 = vsel %vm50, %v35, 0
  %v67 = vsel %vm50, %v36, 0
  %v70 = vsel %vm50, %v37, 0
  %v73 = vsel %vm50, %v38, 0
  %v76 = vsel %vm50, %v39, 0
  %v79 = vsel %vm50, %v40, 0
  %v82 = vsel %vm50, %v41, 0
  %v85 = vsel %vm50, %v42, 0
  %v88 = vsel %vm50, %v43, 0
  %v91 = vsel %vm50, %v44, 0
  %v94 = vsel %vm50, %v45, 0
  %v97 = vsel %vm50, %v46, 0
  %99 = vmatprep.subr.mxu0 0.0
  %100 = vmatpush1.msra.mxu0 %v49
  %101 = vmatprep.subr.mxu0 0.0
  %102 = vmatpush1.msra.mxu0 0.0
  %103 = vmatprep.subr.mxu0 0.0
  %104 = vmatpush1.msra.mxu0 0.0
  %105 = vmatprep.subr.mxu0 0.0
  %106 = vmatpush1.msra.mxu0 0.0
  %107 = vmatprep.subr.mxu0 0.0
  %108 = vmatpush1.msra.mxu0 0.0
  %109 = vmatprep.subr.mxu0 0.0
  %110 = vmatpush1.msra.mxu0 0.0
  %111 = vmatprep.subr.mxu0 0.0
  %112 = vmatpush1.msra.mxu0 0.0
  %113 = vmatprep.subr.mxu0 0.0
  %114 = vmatpush1.msra.mxu0 0.0
  %115 = vmatprep.subr.mxu0 0.0
  %116 = vmatpush1.msra.mxu0 0.0
  %117 = vmatprep.subr.mxu0 0.0
  %118 = vmatpush1.msra.mxu0 0.0
  %119 = vmatprep.subr.mxu0 0.0
  %120 = vmatpush1.msra.mxu0 0.0
  %121 = vmatprep.subr.mxu0 0.0
  %122 = vmatpush1.msra.mxu0 0.0
  %123 = vmatprep.subr.mxu0 0.0
  %124 = vmatpush1.msra.mxu0 0.0
  %125 = vmatprep.subr.mxu0 0.0
  %126 = vmatpush1.msra.mxu0 0.0
  %127 = vmatprep.subr.mxu0 0.0
  %128 = vmatpush1.msra.mxu0 0.0
  %129 = vmatprep.subr.mxu0 0.0
  %130 = vmatpush1.msra.mxu0 0.0
  %131 = vmatprep.subr.mxu0 0.0
  %132 = vmatpush1.msra.mxu0 0.0
  %133 = vmatprep.subr.mxu0 0.0
  %134 = vmatpush1.msra.mxu0 0.0
  %135 = vmatprep.subr.mxu0 0.0
  %136 = vmatpush1.msra.mxu0 0.0
  %137 = vmatprep.subr.mxu0 0.0
  %138 = vmatpush1.msra.mxu0 0.0
  %139 = vmatprep.subr.mxu0 0.0
  %140 = vmatpush1.msra.mxu0 0.0
  %141 = vmatprep.subr.mxu0 0.0
  %142 = vmatpush1.msra.mxu0 0.0
  %143 = vmatprep.subr.mxu0 0.0
  %144 = vmatpush1.msra.mxu0 0.0
  %145 = vmatprep.subr.mxu0 0.0
  %146 = vmatpush1.msra.mxu0 0.0
  %147 = vmatprep.subr.mxu0 0.0
  %148 = vmatpush1.msra.mxu0 0.0
  %149 = vmatprep.subr.mxu0 0.0
  %150 = vmatpush1.msra.mxu0 0.0
  %151 = vmatprep.subr.mxu0 0.0
  %152 = vmatpush1.msra.mxu0 0.0
  %153 = vmatprep.subr.mxu0 0.0
  %154 = vmatpush1.msra.mxu0 0.0
  %155 = vmatprep.subr.mxu0 0.0
  %156 = vmatpush1.msra.mxu0 0.0
  %157 = vmatprep.subr.mxu0 0.0
  %158 = vmatpush1.msra.mxu0 0.0
  %159 = vmatprep.subr.mxu0 0.0
  %160 = vmatpush1.msra.mxu0 0.0
  %161 = vmatprep.subr.mxu0 0.0
  %162 = vmatpush1.msra.mxu0 0.0
  %163 = vmatprep.mubr.f32.mxu0 0.0
  %164 = vmatmul.mubr.f32.gmra.mrb[0].mxu0 %v52
  %v165 = vpop.f32.mrb[0].mxu0
  %v166 = vadd.f32 0.0, %v165
  %v167 = vpop.f32.mrb[0].mxu0
  %168 = vmatprep.mubr.f32.mxu0 0.0
  %169 = vmatmul.mubr.f32.gmra.mrb[0].mxu0 %v55
  %v170 = vpop.f32.mrb[0].mxu0
  %v171 = vadd.f32 0.0, %v170
  %v172 = vpop.f32.mrb[0].mxu0
  %173 = vmatprep.mubr.f32.mxu0 0.0
  %174 = vmatmul.mubr.f32.gmra.mrb[0].mxu0 %v58
  %v175 = vpop.f32.mrb[0].mxu0
  %v176 = vadd.f32 0.0, %v175
  %v177 = vpop.f32.mrb[0].mxu0
  %178 = vmatprep.mubr.f32.mxu0 0.0
  %179 = vmatmul.mubr.f32.gmra.mrb[0].mxu0 %v61
  %v180 = vpop.f32.mrb[0].mxu0
  %v181 = vadd.f32 0.0, %v180
  %v182 = vpop.f32.mrb[0].mxu0
  %183 = vmatprep.mubr.f32.mxu0 0.0
  %184 = vmatmul.mubr.f32.gmra.mrb[0].mxu0 %v64
  %v185 = vpop.f32.mrb[0].mxu0
  %v186 = vadd.f32 0.0, %v185
  %v187 = vpop.f32.mrb[0].mxu0
  %188 = vmatprep.mubr.f32.mxu0 0.0
  %189 = vmatmul.mubr.f32.gmra.mrb[0].mxu0 %v67
  %v190 = vpop.f32.mrb[0].mxu0
  %v191 = vadd.f32 0.0, %v190
  %v192 = vpop.f32.mrb[0].mxu0
  %193 = vmatprep.mubr.f32.mxu0 0.0
  %194 = vmatmul.mubr.f32.gmra.mrb[0].mxu0 %v70
  %v195 = vpop.f32.mrb[0].mxu0
  %v196 = vadd.f32 0.0, %v195
  %v197 = vpop.f32.mrb[0].mxu0
  %198 = vmatprep.mubr.f32.mxu0 0.0
  %199 = vmatmul.mubr.f32.gmra.mrb[0].mxu0 %v73
  %v200 = vpop.f32.mrb[0].mxu0
  %v201 = vadd.f32 0.0, %v200
  %v202 = vpop.f32.mrb[0].mxu0
  %203 = vmatprep.mubr.f32.mxu0 0.0
  %204 = vmatmul.mubr.f32.gmra.mrb[0].mxu0 %v76
  %v205 = vpop.f32.mrb[0].mxu0
  %v206 = vadd.f32 0.0, %v205
  %v207 = vpop.f32.mrb[0].mxu0
  %208 = vmatprep.mubr.f32.mxu0 0.0
  %209 = vmatmul.mubr.f32.gmra.mrb[0].mxu0 %v79
  %v210 = vpop.f32.mrb[0].mxu0
  %v211 = vadd.f32 0.0, %v210
  %v212 = vpop.f32.mrb[0].mxu0
  %213 = vmatprep.mubr.f32.mxu0 0.0
  %214 = vmatmul.mubr.f32.gmra.mrb[0].mxu0 %v82
  %v215 = vpop.f32.mrb[0].mxu0
  %v216 = vadd.f32 0.0, %v215
  %v217 = vpop.f32.mrb[0].mxu0
  %218 = vmatprep.mubr.f32.mxu0 0.0
  %219 = vmatmul.mubr.f32.gmra.mrb[0].mxu0 %v85
  %v220 = vpop.f32.mrb[0].mxu0
  %v221 = vadd.f32 0.0, %v220
  %v222 = vpop.f32.mrb[0].mxu0
  %223 = vmatprep.mubr.f32.mxu0 0.0
  %224 = vmatmul.mubr.f32.gmra.mrb[0].mxu0 %v88
  %v225 = vpop.f32.mrb[0].mxu0
  %v226 = vadd.f32 0.0, %v225
  %v227 = vpop.f32.mrb[0].mxu0
  %228 = vmatprep.mubr.f32.mxu0 0.0
  %229 = vmatmul.mubr.f32.gmra.mrb[0].mxu0 %v91
  %v230 = vpop.f32.mrb[0].mxu0
  %v231 = vadd.f32 0.0, %v230
  %v232 = vpop.f32.mrb[0].mxu0
  %233 = vmatprep.mubr.f32.mxu0 0.0
  %234 = vmatmul.mubr.f32.gmra.mrb[0].mxu0 %v94
  %v235 = vpop.f32.mrb[0].mxu0
  %v236 = vadd.f32 0.0, %v235
  %v237 = vpop.f32.mrb[0].mxu0
  %238 = vmatprep.mubr.f32.mxu0 0.0
  %239 = vmatmul.mubr.f32.gmra.mrb[0].mxu0 %v97
  %v240 = vpop.f32.mrb[0].mxu0
  %v241 = vadd.f32 0.0, %v240
  %v242 = vpop.f32.mrb[0].mxu0
  %243 = vdwg.mxu0
  %v245 = vsel %vm50, %v14, 0
  %v248 = vsel %vm50, %v15, 0
  %v251 = vsel %vm50, %v16, 0
  %v254 = vsel %vm50, %v17, 0
  %v257 = vsel %vm50, %v18, 0
  %v260 = vsel %vm50, %v19, 0
  %v263 = vsel %vm50, %v20, 0
  %v266 = vsel %vm50, %v21, 0
  %v269 = vsel %vm50, %v22, 0
  %v272 = vsel %vm50, %v23, 0
  %v275 = vsel %vm50, %v24, 0
  %v278 = vsel %vm50, %v25, 0
  %v281 = vsel %vm50, %v26, 0
  %v284 = vsel %vm50, %v27, 0
  %v287 = vsel %vm50, %v28, 0
  %v290 = vsel %vm50, %v29, 0
  %292 = vmatprep.subr.mxu0 0.0
  %293 = vmatpush1.msra.mxu0 %v47
  %294 = vmatprep.subr.mxu0 0.0
  %295 = vmatpush1.msra.mxu0 0.0
  %296 = vmatprep.subr.mxu0 0.0
  %297 = vmatpush1.msra.mxu0 0.0
  %298 = vmatprep.subr.mxu0 0.0
  %299 = vmatpush1.msra.mxu0 0.0
  %300 = vmatprep.subr.mxu0 0.0
  %301 = vmatpush1.msra.mxu0 0.0
  %302 = vmatprep.subr.mxu0 0.0
  %303 = vmatpush1.msra.mxu0 0.0
  %304 = vmatprep.subr.mxu0 0.0
  %305 = vmatpush1.msra.mxu0 0.0
  %306 = vmatprep.subr.mxu0 0.0
  %307 = vmatpush1.msra.mxu0 0.0
  %308 = vmatprep.subr.mxu0 0.0
  %309 = vmatpush1.msra.mxu0 0.0
  %310 = vmatprep.subr.mxu0 0.0
  %311 = vmatpush1.msra.mxu0 0.0
  %312 = vmatprep.subr.mxu0 0.0
  %313 = vmatpush1.msra.mxu0 0.0
  %314 = vmatprep.subr.mxu0 0.0
  %315 = vmatpush1.msra.mxu0 0.0
  %316 = vmatprep.subr.mxu0 0.0
  %317 = vmatpush1.msra.mxu0 0.0
  %318 = vmatprep.subr.mxu0 0.0
  %319 = vmatpush1.msra.mxu0 0.0
  %320 = vmatprep.subr.mxu0 0.0
  %321 = vmatpush1.msra.mxu0 0.0
  %322 = vmatprep.subr.mxu0 0.0
  %323 = vmatpush1.msra.mxu0 0.0
  %324 = vmatprep.subr.mxu0 0.0
  %325 = vmatpush1.msra.mxu0 0.0
  %326 = vmatprep.subr.mxu0 0.0
  %327 = vmatpush1.msra.mxu0 0.0
  %328 = vmatprep.subr.mxu0 0.0
  %329 = vmatpush1.msra.mxu0 0.0
  %330 = vmatprep.subr.mxu0 0.0
  %331 = vmatpush1.msra.mxu0 0.0
  %332 = vmatprep.subr.mxu0 0.0
  %333 = vmatpush1.msra.mxu0 0.0
  %334 = vmatprep.subr.mxu0 0.0
  %335 = vmatpush1.msra.mxu0 0.0
  %336 = vmatprep.subr.mxu0 0.0
  %337 = vmatpush1.msra.mxu0 0.0
  %338 = vmatprep.subr.mxu0 0.0
  %339 = vmatpush1.msra.mxu0 0.0
  %340 = vmatprep.subr.mxu0 0.0
  %341 = vmatpush1.msra.mxu0 0.0
  %342 = vmatprep.subr.mxu0 0.0
  %343 = vmatpush1.msra.mxu0 0.0
  %344 = vmatprep.subr.mxu0 0.0
  %345 = vmatpush1.msra.mxu0 0.0
  %346 = vmatprep.subr.mxu0 0.0
  %347 = vmatpush1.msra.mxu0 0.0
  %348 = vmatprep.subr.mxu0 0.0
  %349 = vmatpush1.msra.mxu0 0.0
  %350 = vmatprep.subr.mxu0 0.0
  %351 = vmatpush1.msra.mxu0 0.0
  %352 = vmatprep.subr.mxu0 0.0
  %353 = vmatpush1.msra.mxu0 0.0
  %354 = vmatprep.subr.mxu0 0.0
  %355 = vmatpush1.msra.mxu0 0.0
  %356 = vmatprep.mubr.f32.mxu0 0.0
  %357 = vmatmul.mubr.f32.gmra.mrb[0].mxu0 %v245
  %v358 = vpop.f32.mrb[0].mxu0
  %v359 = vadd.f32 %v166, %v358
  %v360 = vpop.f32.mrb[0].mxu0
  %361 = vmatprep.mubr.f32.mxu0 0.0
  %362 = vmatmul.mubr.f32.gmra.mrb[0].mxu0 %v248
  %v363 = vpop.f32.mrb[0].mxu0
  %v364 = vadd.f32 %v171, %v363
  %v365 = vpop.f32.mrb[0].mxu0
  %366 = vmatprep.mubr.f32.mxu0 0.0
  %367 = vmatmul.mubr.f32.gmra.mrb[0].mxu0 %v251
  %v368 = vpop.f32.mrb[0].mxu0
  %v369 = vadd.f32 %v176, %v368
  %v370 = vpop.f32.mrb[0].mxu0
  %371 = vmatprep.mubr.f32.mxu0 0.0
  %372 = vmatmul.mubr.f32.gmra.mrb[0].mxu0 %v254
  %v373 = vpop.f32.mrb[0].mxu0
  %v374 = vadd.f32 %v181, %v373
  %v375 = vpop.f32.mrb[0].mxu0
  %376 = vmatprep.mubr.f32.mxu0 0.0
  %377 = vmatmul.mubr.f32.gmra.mrb[0].mxu0 %v257
  %v378 = vpop.f32.mrb[0].mxu0
  %v379 = vadd.f32 %v186, %v378
  %v380 = vpop.f32.mrb[0].mxu0
  %381 = vmatprep.mubr.f32.mxu0 0.0
  %382 = vmatmul.mubr.f32.gmra.mrb[0].mxu0 %v260
  %v383 = vpop.f32.mrb[0].mxu0
  %v384 = vadd.f32 %v191, %v383
  %v385 = vpop.f32.mrb[0].mxu0
  %386 = vmatprep.mubr.f32.mxu0 0.0
  %387 = vmatmul.mubr.f32.gmra.mrb[0].mxu0 %v263
  %v388 = vpop.f32.mrb[0].mxu0
  %v389 = vadd.f32 %v196, %v388
  %v390 = vpop.f32.mrb[0].mxu0
  %391 = vmatprep.mubr.f32.mxu0 0.0
  %392 = vmatmul.mubr.f32.gmra.mrb[0].mxu0 %v266
  %v393 = vpop.f32.mrb[0].mxu0
  %v394 = vadd.f32 %v201, %v393
  %v395 = vpop.f32.mrb[0].mxu0
  %396 = vmatprep.mubr.f32.mxu0 0.0
  %397 = vmatmul.mubr.f32.gmra.mrb[0].mxu0 %v269
  %v398 = vpop.f32.mrb[0].mxu0
  %v399 = vadd.f32 %v206, %v398
  %v400 = vpop.f32.mrb[0].mxu0
  %401 = vmatprep.mubr.f32.mxu0 0.0
  %402 = vmatmul.mubr.f32.gmra.mrb[0].mxu0 %v272
  %v403 = vpop.f32.mrb[0].mxu0
  %v404 = vadd.f32 %v211, %v403
  %v405 = vpop.f32.mrb[0].mxu0
  %406 = vmatprep.mubr.f32.mxu0 0.0
  %407 = vmatmul.mubr.f32.gmra.mrb[0].mxu0 %v275
  %v408 = vpop.f32.mrb[0].mxu0
  %v409 = vadd.f32 %v216, %v408
  %v410 = vpop.f32.mrb[0].mxu0
  %411 = vmatprep.mubr.f32.mxu0 0.0
  %412 = vmatmul.mubr.f32.gmra.mrb[0].mxu0 %v278
  %v413 = vpop.f32.mrb[0].mxu0
  %v414 = vadd.f32 %v221, %v413
  %v415 = vpop.f32.mrb[0].mxu0
  %416 = vmatprep.mubr.f32.mxu0 0.0
  %417 = vmatmul.mubr.f32.gmra.mrb[0].mxu0 %v281
  %v418 = vpop.f32.mrb[0].mxu0
  %v419 = vadd.f32 %v226, %v418
  %v420 = vpop.f32.mrb[0].mxu0
  %421 = vmatprep.mubr.f32.mxu0 0.0
  %422 = vmatmul.mubr.f32.gmra.mrb[0].mxu0 %v284
  %v423 = vpop.f32.mrb[0].mxu0
  %v424 = vadd.f32 %v231, %v423
  %v425 = vpop.f32.mrb[0].mxu0
  %426 = vmatprep.mubr.f32.mxu0 0.0
  %427 = vmatmul.mubr.f32.gmra.mrb[0].mxu0 %v287
  %v428 = vpop.f32.mrb[0].mxu0
  %v429 = vadd.f32 %v236, %v428
  %v430 = vpop.f32.mrb[0].mxu0
  %431 = vmatprep.mubr.f32.mxu0 0.0
  %432 = vmatmul.mubr.f32.gmra.mrb[0].mxu0 %v290
  %v433 = vpop.f32.mrb[0].mxu0
  %v434 = vadd.f32 %v241, %v433
  %v435 = vpop.f32.mrb[0].mxu0
  %436 = vdwg.mxu0
  %437 = vadd.xlane.f32.xlu0 %v359
  %v438 = vpop.xlane.xlu0 %437
  %439 = vadd.xlane.f32.xlu0 %v364
  %v440 = vpop.xlane.xlu0 %439
  %441 = vadd.xlane.f32.xlu0 %v369
  %v442 = vpop.xlane.xlu0 %441
  %443 = vadd.xlane.f32.xlu0 %v374
  %v444 = vpop.xlane.xlu0 %443
  %445 = vadd.xlane.f32.xlu0 %v379
  %v446 = vpop.xlane.xlu0 %445
  %447 = vadd.xlane.f32.xlu0 %v384
  %v448 = vpop.xlane.xlu0 %447
  %449 = vadd.xlane.f32.xlu0 %v389
  %v450 = vpop.xlane.xlu0 %449
  %451 = vadd.xlane.f32.xlu0 %v394
  %v452 = vpop.xlane.xlu0 %451
  %453 = vadd.xlane.f32.xlu0 %v399
  %v454 = vpop.xlane.xlu0 %453
  %455 = vadd.xlane.f32.xlu0 %v404
  %v456 = vpop.xlane.xlu0 %455
  %457 = vadd.xlane.f32.xlu0 %v409
  %v458 = vpop.xlane.xlu0 %457
  %459 = vadd.xlane.f32.xlu0 %v414
  %v460 = vpop.xlane.xlu0 %459
  %461 = vadd.xlane.f32.xlu0 %v419
  %v462 = vpop.xlane.xlu0 %461
  %463 = vadd.xlane.f32.xlu0 %v424
  %v464 = vpop.xlane.xlu0 %463
  %465 = vadd.xlane.f32.xlu0 %v429
  %v466 = vpop.xlane.xlu0 %465
  %467 = vadd.xlane.f32.xlu0 %v434
  %v468 = vpop.xlane.xlu0 %467
  %v469 = vmul.f32 %v438, 0.125
  %v470 = vmul.f32 %v440, 0.125
  %v471 = vmul.f32 %v442, 0.125
  %v472 = vmul.f32 %v444, 0.125
  %v473 = vmul.f32 %v446, 0.125
  %v474 = vmul.f32 %v448, 0.125
  %v475 = vmul.f32 %v450, 0.125
  %v476 = vmul.f32 %v452, 0.125
  %v477 = vmul.f32 %v454, 0.125
  %v478 = vmul.f32 %v456, 0.125
  %v479 = vmul.f32 %v458, 0.125
  %v480 = vmul.f32 %v460, 0.125
  %v481 = vmul.f32 %v462, 0.125
  %v482 = vmul.f32 %v464, 0.125
  %v483 = vmul.f32 %v466, 0.125
  %v484 = vmul.f32 %v468, 0.125
  %v485 = vsub.f32 %v359, %v469
  %v486 = vsub.f32 %v364, %v470
  %v487 = vsub.f32 %v369, %v471
  %v488 = vsub.f32 %v374, %v472
  %v489 = vsub.f32 %v379, %v473
  %v490 = vsub.f32 %v384, %v474
  %v491 = vsub.f32 %v389, %v475
  %v492 = vsub.f32 %v394, %v476
  %v493 = vsub.f32 %v399, %v477
  %v494 = vsub.f32 %v404, %v478
  %v495 = vsub.f32 %v409, %v479
  %v496 = vsub.f32 %v414, %v480
  %v497 = vsub.f32 %v419, %v481
  %v498 = vsub.f32 %v424, %v482
  %v499 = vsub.f32 %v429, %v483
  %v500 = vsub.f32 %v434, %v484
  %v501 = vlaneseq
  %v502 = vand.u32 %v501, 127
  %vm503 = vcmp.lt.s32.totalorder %v502, 8
  %v504 = vsel %vm503, 1, 0
  %vm505 = vcmp.eq.s32.totalorder %v504, 1
  %v506 = vsel %vm505, %v485, 0.0
  %v507 = vsel %vm505, %v486, 0.0
  %v508 = vsel %vm505, %v487, 0.0
  %v509 = vsel %vm505, %v488, 0.0
  %v510 = vsel %vm505, %v489, 0.0
  %v511 = vsel %vm505, %v490, 0.0
  %v512 = vsel %vm505, %v491, 0.0
  %v513 = vsel %vm505, %v492, 0.0
  %v514 = vsel %vm505, %v493, 0.0
  %v515 = vsel %vm505, %v494, 0.0
  %v516 = vsel %vm505, %v495, 0.0
  %v517 = vsel %vm505, %v496, 0.0
  %v518 = vsel %vm505, %v497, 0.0
  %v519 = vsel %vm505, %v498, 0.0
  %v520 = vsel %vm505, %v499, 0.0
  %v521 = vsel %vm505, %v500, 0.0
  %v522 = vmul.f32 %v506, %v506
  %v523 = vmul.f32 %v507, %v507
  %v524 = vmul.f32 %v508, %v508
  %v525 = vmul.f32 %v509, %v509
  %v526 = vmul.f32 %v510, %v510
  %v527 = vmul.f32 %v511, %v511
  %v528 = vmul.f32 %v512, %v512
  %v529 = vmul.f32 %v513, %v513
  %v530 = vmul.f32 %v514, %v514
  %v531 = vmul.f32 %v515, %v515
  %v532 = vmul.f32 %v516, %v516
  %v533 = vmul.f32 %v517, %v517
  %v534 = vmul.f32 %v518, %v518
  %v535 = vmul.f32 %v519, %v519
  %v536 = vmul.f32 %v520, %v520
  %v537 = vmul.f32 %v521, %v521
  %538 = vadd.xlane.f32.xlu0 %v522
  %v539 = vpop.xlane.xlu0 %538
  %540 = vadd.xlane.f32.xlu0 %v523
  %v541 = vpop.xlane.xlu0 %540
  %542 = vadd.xlane.f32.xlu0 %v524
  %v543 = vpop.xlane.xlu0 %542
  %544 = vadd.xlane.f32.xlu0 %v525
  %v545 = vpop.xlane.xlu0 %544
  %546 = vadd.xlane.f32.xlu0 %v526
  %v547 = vpop.xlane.xlu0 %546
  %548 = vadd.xlane.f32.xlu0 %v527
  %v549 = vpop.xlane.xlu0 %548
  %550 = vadd.xlane.f32.xlu0 %v528
  %v551 = vpop.xlane.xlu0 %550
  %552 = vadd.xlane.f32.xlu0 %v529
  %v553 = vpop.xlane.xlu0 %552
  %554 = vadd.xlane.f32.xlu0 %v530
  %v555 = vpop.xlane.xlu0 %554
  %556 = vadd.xlane.f32.xlu0 %v531
  %v557 = vpop.xlane.xlu0 %556
  %558 = vadd.xlane.f32.xlu0 %v532
  %v559 = vpop.xlane.xlu0 %558
  %560 = vadd.xlane.f32.xlu0 %v533
  %v561 = vpop.xlane.xlu0 %560
  %562 = vadd.xlane.f32.xlu0 %v534
  %v563 = vpop.xlane.xlu0 %562
  %564 = vadd.xlane.f32.xlu0 %v535
  %v565 = vpop.xlane.xlu0 %564
  %566 = vadd.xlane.f32.xlu0 %v536
  %v567 = vpop.xlane.xlu0 %566
  %568 = vadd.xlane.f32.xlu0 %v537
  %v569 = vpop.xlane.xlu0 %568
  %v570 = vmul.f32 %v539, 0.125
  %v571 = vmul.f32 %v541, 0.125
  %v572 = vmul.f32 %v543, 0.125
  %v573 = vmul.f32 %v545, 0.125
  %v574 = vmul.f32 %v547, 0.125
  %v575 = vmul.f32 %v549, 0.125
  %v576 = vmul.f32 %v551, 0.125
  %v577 = vmul.f32 %v553, 0.125
  %v578 = vmul.f32 %v555, 0.125
  %v579 = vmul.f32 %v557, 0.125
  %v580 = vmul.f32 %v559, 0.125
  %v581 = vmul.f32 %v561, 0.125
  %v582 = vmul.f32 %v563, 0.125
  %v583 = vmul.f32 %v565, 0.125
  %v584 = vmul.f32 %v567, 0.125
  %v585 = vmul.f32 %v569, 0.125
  %v586 = vadd.f32 %v570, 1e-05
  %v587 = vadd.f32 %v571, 1e-05
  %v588 = vadd.f32 %v572, 1e-05
  %v589 = vadd.f32 %v573, 1e-05
  %v590 = vadd.f32 %v574, 1e-05
  %v591 = vadd.f32 %v575, 1e-05
  %v592 = vadd.f32 %v576, 1e-05
  %v593 = vadd.f32 %v577, 1e-05
  %v594 = vadd.f32 %v578, 1e-05
  %v595 = vadd.f32 %v579, 1e-05
  %v596 = vadd.f32 %v580, 1e-05
  %v597 = vadd.f32 %v581, 1e-05
  %v598 = vadd.f32 %v582, 1e-05
  %v599 = vadd.f32 %v583, 1e-05
  %v600 = vadd.f32 %v584, 1e-05
  %v601 = vadd.f32 %v585, 1e-05
  %v602 = vrsqrt.pop %v586
  %v603 = vrsqrt.pop %v587
  %v604 = vrsqrt.pop %v588
  %v605 = vrsqrt.pop %v589
  %v606 = vrsqrt.pop %v590
  %v607 = vrsqrt.pop %v591
  %v608 = vrsqrt.pop %v592
  %v609 = vrsqrt.pop %v593
  %v610 = vrsqrt.pop %v594
  %v611 = vrsqrt.pop %v595
  %v612 = vrsqrt.pop %v596
  %v613 = vrsqrt.pop %v597
  %v614 = vrsqrt.pop %v598
  %v615 = vrsqrt.pop %v599
  %v616 = vrsqrt.pop %v600
  %v617 = vrsqrt.pop %v601
  %v618 = vld [vmem:[%s2] sm:$0x1]
  %v619 = vld [vmem:[%s2 + $0x1] sm:$0x1]
  %v620 = vmul.f32 %v485, %v602
  %v621 = vmul.f32 %v486, %v603
  %v622 = vmul.f32 %v487, %v604
  %v623 = vmul.f32 %v488, %v605
  %v624 = vmul.f32 %v489, %v606
  %v625 = vmul.f32 %v490, %v607
  %v626 = vmul.f32 %v491, %v608
  %v627 = vmul.f32 %v492, %v609
  %v628 = vmul.f32 %v493, %v610
  %v629 = vmul.f32 %v494, %v611
  %v630 = vmul.f32 %v495, %v612
  %v631 = vmul.f32 %v496, %v613
  %v632 = vmul.f32 %v497, %v614
  %v633 = vmul.f32 %v498, %v615
  %v634 = vmul.f32 %v499, %v616
  %v635 = vmul.f32 %v500, %v617
  %v636 = vlaneseq
  %v637 = vshrl.u32 %v636, 7
  %v638 = vsub.s32 0, %v637
  %v639 = vrot.slane %v618, %v638
  %v640 = vmul.f32 %v620, %v639
  %v641 = vmul.f32 %v621, %v639
  %v642 = vmul.f32 %v622, %v639
  %v643 = vmul.f32 %v623, %v639
  %v644 = vmul.f32 %v624, %v639
  %v645 = vmul.f32 %v625, %v639
  %v646 = vmul.f32 %v626, %v639
  %v647 = vmul.f32 %v627, %v639
  %v648 = vmul.f32 %v628, %v639
  %v649 = vmul.f32 %v629, %v639
  %v650 = vmul.f32 %v630, %v639
  %v651 = vmul.f32 %v631, %v639
  %v652 = vmul.f32 %v632, %v639
  %v653 = vmul.f32 %v633, %v639
  %v654 = vmul.f32 %v634, %v639
  %v655 = vmul.f32 %v635, %v639
  %v656 = vlaneseq
  %v657 = vshrl.u32 %v656, 7
  %v658 = vsub.s32 0, %v657
  %v659 = vrot.slane %v619, %v658
  %v660 = vadd.f32 %v640, %v659
  %v661 = vadd.f32 %v641, %v659
  %v662 = vadd.f32 %v642, %v659
  %v663 = vadd.f32 %v643, %v659
  %v664 = vadd.f32 %v644, %v659
  %v665 = vadd.f32 %v645, %v659
  %v666 = vadd.f32 %v646, %v659
  %v667 = vadd.f32 %v647, %v659
  %v668 = vadd.f32 %v648, %v659
  %v669 = vadd.f32 %v649, %v659
  %v670 = vadd.f32 %v650, %v659
  %v671 = vadd.f32 %v651, %v659
  %v672 = vadd.f32 %v652, %v659
  %v673 = vadd.f32 %v653, %v659
  %v674 = vadd.f32 %v654, %v659
  %v675 = vadd.f32 %v655, %v659
  %676 = vst [vmem:[%s3] sm:$0xff] %v660
  %677 = vst [vmem:[%s3 + $0x8] sm:$0xff] %v661
  %678 = vst [vmem:[%s3 + $0x10] sm:$0xff] %v662
  %679 = vst [vmem:[%s3 + $0x18] sm:$0xff] %v663
  %680 = vst [vmem:[%s3 + $0x20] sm:$0xff] %v664
  %681 = vst [vmem:[%s3 + $0x28] sm:$0xff] %v665
  %682 = vst [vmem:[%s3 + $0x30] sm:$0xff] %v666
  %683 = vst [vmem:[%s3 + $0x38] sm:$0xff] %v667
  %684 = vst [vmem:[%s3 + $0x40] sm:$0xff] %v668
  %685 = vst [vmem:[%s3 + $0x48] sm:$0xff] %v669
  %686 = vst [vmem:[%s3 + $0x50] sm:$0xff] %v670
  %687 = vst [vmem:[%s3 + $0x58] sm:$0xff] %v671
  %688 = vst [vmem:[%s3 + $0x60] sm:$0xff] %v672
  %689 = vst [vmem:[%s3 + $0x68] sm:$0xff] %v673
  %690 = vst [vmem:[%s3 + $0x70] sm:$0xff] %v674
  %691 = vst [vmem:[%s3 + $0x78] sm:$0xff] %v675
  // Predicated region
  $region14: #{patch_merge.1} parent=0 // pred_check
    _
  $region15: #{patch_merge.1} parent=0 // pred_check_branch
    %693 = sbr.rel (0) target = $region17
  $region16: #{patch_merge.1} parent=0 // pred_region
    _
  $region17: #{patch_merge.1} parent=0 // pred_fallthru
    _
  // Predicated region
  $region18: #{patch_merge.1} parent=0 // pred_check
    _
  $region19: #{patch_merge.1} parent=0 // pred_check_branch
    %695 = sbr.rel (0) target = $region21
  $region20: #{patch_merge.1} parent=0 // pred_region
    _
  $region21: #{patch_merge.1} parent=0 // pred_fallthru
    _

</llo_original>
